<compile_context>
chip_gen: v6e
topology: v6e:2x2x1
jax: 0.10.0
libtpu: 0.0.40
codegen_flags: <defaults>
</compile_context>

<pallas_src>
import jax
import jax.numpy as jnp
from jax.experimental import pallas as pl
from jax.experimental.pallas import tpu as pltpu


# ----------------------------------------------------------------------------
# Glue: mel filterbank construction (torchaudio.functional.melscale_fbanks)
# and its pseudo-inverse.  Pure JAX, runs once at setup time.
# ----------------------------------------------------------------------------
def _hz_to_mel_htk(freq):
    return 2595.0 * jnp.log10(1.0 + freq / 700.0)


def _mel_to_hz_htk(mel):
    return 700.0 * (jnp.power(10.0, mel / 2595.0) - 1.0)


def melscale_fbanks(n_freqs, f_min, f_max, n_mels, sample_rate,
                    norm=None, mel_scale="htk"):
    # TODO(synk): only mel_scale='htk' and norm=None (the module defaults) are implemented.
    assert mel_scale == "htk" and norm is None
    all_freqs = jnp.linspace(0.0, sample_rate // 2, n_freqs)          # (n_freqs,)
    m_min = _hz_to_mel_htk(jnp.asarray(f_min, jnp.float32))
    m_max = _hz_to_mel_htk(jnp.asarray(f_max, jnp.float32))
    m_pts = jnp.linspace(m_min, m_max, n_mels + 2)                    # (n_mels+2,)
    f_pts = _mel_to_hz_htk(m_pts)                                     # (n_mels+2,)

    f_diff = f_pts[1:] - f_pts[:-1]                                   # (n_mels+1,)
    slopes = f_pts[None, :] - all_freqs[:, None]                      # (n_freqs, n_mels+2)
    down_slopes = (-1.0 * slopes[:, :-2]) / f_diff[:-1]               # (n_freqs, n_mels)
    up_slopes = slopes[:, 2:] / f_diff[1:]                            # (n_freqs, n_mels)
    fb = jnp.maximum(0.0, jnp.minimum(down_slopes, up_slopes))        # (n_freqs, n_mels)
    return fb.astype(jnp.float32)


# ----------------------------------------------------------------------------
# Tile / VMEM sizing helpers (generation-aware).
# ----------------------------------------------------------------------------
_MAX_TILE = 2048          # lane-tile cap (columns); multiple of 128


def _round_up(x, m):
    return ((x + m - 1) // m) * m


def _vmem_budget_bytes():
    """VMEM budget for this kernel: half of physical VMEM, capped at 64 MiB.

    v5e/v6e (128 MiB physical) -> 64 MiB; v7x (64 MiB physical) -> 32 MiB.
    Falls back to the conservative v7x figure if the query is unavailable.
    """
    phys = 64 * 1024 * 1024
    try:
        phys = int(pltpu.get_tpu_info().vmem_capacity_bytes)
    except Exception:
        pass
    return int(min(phys // 2, 64 * 1024 * 1024))


def _max_tile_for_vmem(n_freqs, n_mels, in_bytes, out_bytes, w_bytes, budget):
    """Largest column tile whose double-buffered in/out blocks plus the
    resident weight fit the VMEM budget (capped at _MAX_TILE)."""
    per_col = 2 * (n_freqs * out_bytes + n_mels * in_bytes)   # 2-deep pipeline
    fixed = 2 * n_freqs * n_mels * w_bytes + (2 << 20)        # weight bufs + slack
    fit_cols = (budget - fixed) // per_col
    tile = (fit_cols // 128) * 128
    return int(max(128, min(_MAX_TILE, tile)))


def _pick_tile(T, max_tile):
    """Column tile along the time axis.

    * T small (< 256) and it fits: one full-extent block (block dim == array
      dim is always a legal block shape; tiny problems don't need tiling).
    * Otherwise: multiple of 128, as large as VMEM allows, but always >= 2
      grid steps so v7x megacore can shard the column axis across both TCs.
    """
    if T < 256 and T <= max_tile:
        return int(T)
    half = _round_up(pl.cdiv(T, 2), 128)      # guarantees >= 2 steps for T >= 256
    return int(min(max_tile, half))


# ----------------------------------------------------------------------------
# Pallas kernel: matmul + clamp (the hot path of forward()).
# ----------------------------------------------------------------------------
def _inv_mel_kernel(w_ref, mel_ref, out_ref):
    # w_ref  : (n_freqs, n_mels)  VMEM, resident (constant index map)
    # mel_ref: (n_mels, tile)     VMEM
    # out_ref: (n_freqs, tile)    VMEM
    spec = jnp.dot(w_ref[...], mel_ref[...],
                   preferred_element_type=jnp.float32)   # f32 accumulation on MXU
    out_ref[...] = jnp.maximum(spec, 0.0).astype(out_ref.dtype)


def _inverse_mel_batched(w, mel3d, out_dtype, tile, vmem_limit):
    """w: (F, K); mel3d: (B, K, T) -> clamp(W @ mel, 0) of shape (B, F, T).

    grid = (B, ceil(T / tile)); ragged final column block is masked by the
    pipeline (exact out_shape, no pad/slice passes in the wrapper).
    """
    F, K = w.shape
    B, _, T = mel3d.shape
    n_col = pl.cdiv(T, tile)
    in_b = jnp.dtype(mel3d.dtype).itemsize
    out_b = jnp.dtype(out_dtype).itemsize
    w_b = jnp.dtype(w.dtype).itemsize
    return pl.pallas_call(
        _inv_mel_kernel,
        out_shape=jax.ShapeDtypeStruct((B, F, T), out_dtype),
        grid_spec=pltpu.PrefetchScalarGridSpec(
            num_scalar_prefetch=0,
            grid=(B, n_col),
            in_specs=[
                # Constant index map -> weight tile stays resident in VMEM.
                pl.BlockSpec((F, K), lambda b, j: (0, 0)),
                # Batch dim squeezed out of the kernel ref.
                pl.BlockSpec((None, K, tile), lambda b, j: (b, 0, j)),
            ],
            out_specs=pl.BlockSpec((None, F, tile), lambda b, j: (b, 0, j)),
        ),
        compiler_params=pltpu.CompilerParams(
            dimension_semantics=("parallel", "parallel"),   # megacore-shardable
            vmem_limit_bytes=int(vmem_limit)),
        cost_estimate=pl.CostEstimate(
            flops=2 * B * F * K * T,
            transcendentals=0,
            bytes_accessed=w_b * F * K + in_b * B * K * T + out_b * B * F * T),
    )(w, mel3d)


# ----------------------------------------------------------------------------
# Module-equivalent wrapper.
# ----------------------------------------------------------------------------
class InverseMelScale:
    def __init__(self, sample_rate, n_fft, n_mels, f_min=0.0, f_max=None,
                 norm=None, mel_scale="htk",
                 compute_dtype=jnp.float32, out_dtype=None):
        # Honour an explicit f_max (the original `or` silently mapped 0.0 -> Nyquist).
        if f_max is None:
            f_max = float(sample_rate // 2)
        n_freqs = n_fft // 2 + 1
        fb = melscale_fbanks(n_freqs, f_min, f_max, n_mels, sample_rate,
                             norm, mel_scale)                          # (n_freqs, n_mels)
        # Matches torchaudio's pinv-based inverse (not the old SGD solver).
        self.fb_pinv = jnp.linalg.pinv(fb)                             # (n_mels, n_freqs)
        # Precompute the transposed weight once; cast at init (one-time cost).
        self.w = jnp.transpose(self.fb_pinv).astype(compute_dtype)     # (n_freqs, n_mels)
        # out_dtype=None -> match the input dtype.  bfloat16 halves the dominant
        # output HBM stream while accumulation stays f32 in the kernel (results
        # then only match an f32 reference to bf16 precision, by design).
        self.out_dtype = out_dtype
        self.n_freqs = n_freqs
        self.n_mels = n_mels

    def __call__(self, melspec):
        # melspec: (..., n_mels, T)  ->  (..., n_freqs, T)
        shape = melspec.shape
        n_mels, T = shape[-2], shape[-1]
        assert n_mels == self.n_mels
        out_dtype = melspec.dtype if self.out_dtype is None else self.out_dtype

        # Metadata-only flatten of leading dims; NO dtype cast here (a wrapper
        # cast would be a separate full HBM read+write pass on the input).
        mel3d = melspec.reshape((-1, n_mels, T))
        F, K = self.n_freqs, n_mels

        budget = _vmem_budget_bytes()
        max_tile = _max_tile_for_vmem(
            F, K,
            jnp.dtype(mel3d.dtype).itemsize,
            jnp.dtype(out_dtype).itemsize,
            jnp.dtype(self.w.dtype).itemsize,
            budget)
        tile = _pick_tile(T, max_tile)

        out = _inverse_mel_batched(self.w, mel3d, out_dtype, tile, budget)  # (B, F, T)
        return out.reshape(shape[:-2] + (F, T))


# ----------------------------------------------------------------------------
# Demo / self-check.
# ----------------------------------------------------------------------------
if __name__ == "__main__":
    sample_rate = 16000
    n_fft = 126        # -> n_freqs = 64
    n_mels = 16

    key = jax.random.PRNGKey(0)
    k1, k2, k3 = jax.random.split(key, 3)

    mod = InverseMelScale(sample_rate, n_fft, n_mels)
    w_ref = jnp.transpose(mod.fb_pinv)                                 # (n_freqs, n_mels)

    def ref_fn(mel):
        return jnp.maximum(jnp.einsum("fm,...mt->...ft", w_ref, mel), 0.0)

    # Case 1: short time axis (T < 128): full-extent column block, grid (6, 1).
    mel_a = jax.random.uniform(k1, (2, 3, n_mels, 32), dtype=jnp.float32)
    out_a = jax.block_until_ready(mod(mel_a))
    assert out_a.shape == (2, 3, n_fft // 2 + 1, 32)
    assert jnp.allclose(out_a, ref_fn(mel_a), atol=1e-5, rtol=1e-5)

    # Case 2: lane-dense, exactly divisible: grid (2, 2), 128-wide column tiles.
    mel_b = jax.random.uniform(k2, (2, n_mels, 256), dtype=jnp.float32)
    out_b = jax.block_until_ready(mod(mel_b))
    assert out_b.shape == (2, n_fft // 2 + 1, 256)
    assert jnp.allclose(out_b, ref_fn(mel_b), atol=1e-5, rtol=1e-5)

    # Case 3: ragged T (not a multiple of the tile): masked boundary block,
    # exact out_shape, no pad/slice passes.
    mel_c = jax.random.uniform(k3, (1, n_mels, 300), dtype=jnp.float32)
    out_c = jax.block_until_ready(mod(mel_c))
    assert out_c.shape == (1, n_fft // 2 + 1, 300)
    assert jnp.allclose(out_c, ref_fn(mel_c), atol=1e-5, rtol=1e-5)

    # Case 4: optional bf16 output path (f32 accumulation, bf16 store).
    mod_bf16 = InverseMelScale(sample_rate, n_fft, n_mels, out_dtype=jnp.bfloat16)
    out_d = jax.block_until_ready(mod_bf16(mel_b))
    assert out_d.dtype == jnp.bfloat16
    assert jnp.allclose(out_d.astype(jnp.float32), ref_fn(mel_b),
                        atol=5e-2, rtol=5e-2)

    print("KERNEL_OK")
</pallas_src>

<mosaic_0001>
module attributes {stable_mosaic.version = 11 : i64} {
  func.func @_inv_mel_kernel(%arg0: i32, %arg1: i32, %arg2: memref<64x16xf32, #tpu.memory_space<vmem>>, %arg3: memref<1x16x32xf32, #tpu.memory_space<vmem>>, %arg4: memref<1x64x32xf32, #tpu.memory_space<vmem>>) attributes {dimension_semantics = [#tpu.dimension_semantics<parallel>, #tpu.dimension_semantics<parallel>], iteration_bounds = array<i64: 6, 1>, scalar_prefetch = 0 : i64, scratch_operands = 0 : i64, tpu.core_type = #tpu.core_type<tc>, window_params = [{pipeline_mode = #tpu.pipeline_mode<synchronous>, transform_indices = @transform_0, window_bounds = array<i64: 64, 16>}, {transform_indices = @transform_1, window_bounds = array<i64: 1, 16, 32>}, {transform_indices = @transform_2, window_bounds = array<i64: 1, 64, 32>}]} {
    %c0 = arith.constant 0 : index
    %c0_0 = arith.constant 0 : index
    %0 = vector.load %arg2[%c0, %c0_0] : memref<64x16xf32, #tpu.memory_space<vmem>>, vector<64x16xf32>
    %c0_1 = arith.constant 0 : index
    %c0_2 = arith.constant 0 : index
    %c0_3 = arith.constant 0 : index
    %1 = vector.load %arg3[%c0_1, %c0_2, %c0_3] : memref<1x16x32xf32, #tpu.memory_space<vmem>>, vector<1x16x32xf32>
    %2 = vector.shape_cast %1 : vector<1x16x32xf32> to vector<16x32xf32>
    %cst = arith.constant dense<0.000000e+00> : vector<64x32xf32>
    %3 = tpu.matmul %0, %2, %cst {dimension_numbers = #tpu.dot_dimension_numbers<[1], [0], [0], [1], [0, 0, 1, 1], [], []>} : vector<64x16xf32>, vector<16x32xf32>, vector<64x32xf32> -> vector<64x32xf32>
    %cst_4 = arith.constant 0.000000e+00 : f32
    %4 = vector.broadcast %cst_4 : f32 to vector<64x32xf32>
    %5 = arith.maximumf %3, %4 : vector<64x32xf32>
    %c0_5 = arith.constant 0 : index
    %c0_6 = arith.constant 0 : index
    %c0_7 = arith.constant 0 : index
    %6 = vector.load %arg4[%c0_5, %c0_6, %c0_7] : memref<1x64x32xf32, #tpu.memory_space<vmem>>, vector<1x64x32xf32>
    %7 = vector.shape_cast %6 : vector<1x64x32xf32> to vector<64x32xf32>
    %8 = vector.shape_cast %5 : vector<64x32xf32> to vector<1x64x32xf32>
    tpu.vector_store %arg4[%c0_5, %c0_6, %c0_7], %8 {strides = array<i32>} : memref<1x64x32xf32, #tpu.memory_space<vmem>>, vector<1x64x32xf32>,
    return
  }
  func.func @transform_0(%arg0: i32, %arg1: i32) -> (i32, i32) {
    %c0_i32 = arith.constant 0 : i32
    %c0_i32_0 = arith.constant 0 : i32
    %c0_i32_1 = arith.constant 0 : i32
    return %c0_i32, %c0_i32_0 : i32, i32
  }
  func.func @transform_1(%arg0: i32, %arg1: i32) -> (i32, i32, i32) {
    %c0_i32 = arith.constant 0 : i32
    %c0_i32_0 = arith.constant 0 : i32
    return %arg0, %c0_i32, %arg1 : i32, i32, i32
  }
  func.func @transform_2(%arg0: i32, %arg1: i32) -> (i32, i32, i32) {
    %c0_i32 = arith.constant 0 : i32
    %c0_i32_0 = arith.constant 0 : i32
    return %arg0, %c0_i32, %arg1 : i32, i32, i32
  }
}

</mosaic_0001>

<llo_original>
// kernel: tpu_custom_call.1
$region0: #{tpu_custom_call.1}
  #allocation0 [shape = 'u32[]', space=smem, size = 0x4, offset = 0x4, fixed_abs, tag = 'smem constant byte address 0x4 - core index']
  #allocation1 [shape = 'u32[144,128]{1,0:T(1,128)}', space=vmem, size = 0x12000, scoped, tag = 'internal scratch']
  %s0 = inlined_call_operand.vmem [shape: f32[64,16], index: 0, kind: input, shape index: {}]
  %s1 = inlined_call_operand.hbm [shape: f32[6,16,32], index: 1, kind: input, shape index: {}]
  %s2 = inlined_call_operand.vmem [shape: f32[6,64,32], index: 2, kind: output, shape index: {}]
  %s3 = sld [smem:[#allocation0]]
  $region45: #{tpu_custom_call.1} parent=0
    _
  %s5 = ssub.s32 1, %s3
  %s6 = scalar_select 0, %s5, %s3
  $region1: #{tpu_custom_call.1} parent=0
    #allocation2 [shape = 'u8[16384]{0}', space=vmem, size = 0x4000, scoped, tag = 'input window, operand 1']
    #allocation3 [shape = 's32[2]{0}', space=sflag, size = 0x8, scoped, tag = 'scoped memory for tpu_custom_call.1']
    %7 = vsyncpa [#allocation3], 0
    %s8 = scalar_lea.sflag [#allocation3], 1
    %9 = vsyncpa %s8, 0
    loop: start=0, step=1, limit=8
    $region2: #{tpu_custom_call.1} parent=1 // loop_pre_header
      _
    $region3: #{tpu_custom_call.1} parent=1 // loop_header
      %s11 = sphi 0, %s15
      %p12 = scmp.ge.s32.totalorder %s11, 8
      %s18 = sphi 0, %s30
      %s19 = sphi 0, %s26
      %s20 = sphi 0, %s18
      %s21 = sphi 0, %s19
      %s22 = sphi 0, %s20
      %s23 = sphi 0, %s21
      %s31 = sphi 0, %s31
      %s33 = sphi 0, %s31
      %s34 = sphi 0, %s33
      %s48 = sphi 0, %s34
      %s56 = sphi 0, %s58
      %s59 = sphi 0, %s56
      %s60 = sphi 0, %s59
      %s76 = sphi 0, %s60
      %s84 = sphi 0, %s86
      %s87 = sphi 0, %s84
      %s88 = sphi 0, %s87
      %s104 = sphi 0, %s88
    $region4: #{tpu_custom_call.1} parent=1 // loop_header_branch
      %14 = sbr.rel (%p12) target = $region8
    $region5: #{tpu_custom_call.1} parent=1 // loop_body
      %s16 = ssub.s32 %s11, 1
      %s17 = ssub.s32 %s11, 2
      %s24 = sadd.s32 1, %s19
      %p25 = scmp.ge.s32.totalorder %s24, 1
      %s26 = scalar_select %p25, 0, %s24
      %s27 = sadd.s32 1, %s18
      %s28 = scalar_select %p25, %s27, %s18
      %p29 = scmp.ge.s32.totalorder %s28, 6
      %s30 = scalar_select %p29, 0, %s28
      %s32 = sadd.s32 %s31, 1
      %p35 = scmp.eq.s32.totalorder %s11, 5
      %p36 = scmp.ne.s32.totalorder %s31, %s33
      %p37 = scmp.eq.s32.totalorder %s11, 0
      %p38 = por %p36, %p37
      %p39 = scmp.ne.s32.totalorder %s31, %s33
      %p40 = scmp.eq.s32.totalorder %s16, 5
      %p41 = por %p39, %p40
      %p42 = scmp.ne.s32.totalorder %s33, %s34
      %p43 = scmp.eq.s32.totalorder %s16, 0
      %p44 = por %p42, %p43
      %p45 = scmp.ne.s32.totalorder %s33, %s34
      %p46 = scmp.eq.s32.totalorder %s17, 5
      %p47 = por %p45, %p46
      %p49 = scmp.ne.s32.totalorder %s34, %s48
      %p50 = scmp.eq.s32.totalorder %s17, 0
      %p51 = por %p49, %p50
      %s52 = ssub.s32 %s18, %s30
      %s53 = ssub.s32 %s19, %s26
      %s54 = sor.u32 %s52, %s53
      %p55 = scmp.eq.s32.totalorder %s54, 0
      %s57 = sadd.s32 %s56, 1
      %s58 = scalar_select %p55, %s56, %s57
      %p61 = pneg %p55
      %p62 = scmp.eq.s32.totalorder %s11, 5
      %p63 = por %p61, %p62
      %p64 = scmp.ne.s32.totalorder %s56, %s59
      %p65 = scmp.eq.s32.totalorder %s11, 0
      %p66 = por %p64, %p65
      %p67 = scmp.ne.s32.totalorder %s56, %s59
      %p68 = scmp.eq.s32.totalorder %s16, 5
      %p69 = por %p67, %p68
      %p70 = scmp.ne.s32.totalorder %s59, %s60
      %p71 = scmp.eq.s32.totalorder %s16, 0
      %p72 = por %p70, %p71
      %p73 = scmp.ne.s32.totalorder %s59, %s60
      %p74 = scmp.eq.s32.totalorder %s17, 5
      %p75 = por %p73, %p74
      %p77 = scmp.ne.s32.totalorder %s60, %s76
      %p78 = scmp.eq.s32.totalorder %s17, 0
      %p79 = por %p77, %p78
      %s80 = ssub.s32 %s18, %s30
      %s81 = ssub.s32 %s19, %s26
      %s82 = sor.u32 %s80, %s81
      %p83 = scmp.eq.s32.totalorder %s82, 0
      %s85 = sadd.s32 %s84, 1
      %s86 = scalar_select %p83, %s84, %s85
      %p89 = pneg %p83
      %p90 = scmp.eq.s32.totalorder %s11, 5
      %p91 = por %p89, %p90
      %p92 = scmp.ne.s32.totalorder %s84, %s87
      %p93 = scmp.eq.s32.totalorder %s11, 0
      %p94 = por %p92, %p93
      %p95 = scmp.ne.s32.totalorder %s84, %s87
      %p96 = scmp.eq.s32.totalorder %s16, 5
      %p97 = por %p95, %p96
      %p98 = scmp.ne.s32.totalorder %s87, %s88
      %p99 = scmp.eq.s32.totalorder %s16, 0
      %p100 = por %p98, %p99
      %p101 = scmp.ne.s32.totalorder %s87, %s88
      %p102 = scmp.eq.s32.totalorder %s17, 5
      %p103 = por %p101, %p102
      %p105 = scmp.ne.s32.totalorder %s88, %s104
      %p106 = scmp.eq.s32.totalorder %s17, 0
      %p107 = por %p105, %p106
      %p108 = scmp.le.s32.totalorder 1, %s11
      %p109 = scmp.lt.s32.totalorder %s11, 7
      %p110 = pnand %p108, %p109
      %p111 = pneg %p110
      // Predicated region
      $region9: #{tpu_custom_call.1} parent=5 // pred_check
        _
      $region10: #{tpu_custom_call.1} parent=5 // pred_check_branch
        %113 = sbr.rel (%p110) target = $region12
      $region11: #{tpu_custom_call.1} parent=5 // pred_region
        %s114 = ssub.s32 %s11, 1
        // Predicated region
        $region13: #{tpu_custom_call.1} parent=11 // pred_check
          %p115 = pneg %p44
        $region14: #{tpu_custom_call.1} parent=11 // pred_check_branch
          %117 = sbr.rel (%p115) target = $region16
        $region15: #{tpu_custom_call.1} parent=11 // pred_region
          _
        $region16: #{tpu_custom_call.1} parent=11 // pred_fallthru
          _
      $region12: #{tpu_custom_call.1} parent=5 // pred_fallthru
        _
      %p118 = scmp.lt.s32.totalorder %s11, 6
      // Predicated region
      $region17: #{tpu_custom_call.1} parent=5 // pred_check
        %p119 = pneg %p118
      $region18: #{tpu_custom_call.1} parent=5 // pred_check_branch
        %121 = sbr.rel (%p119) target = $region20
      $region19: #{tpu_custom_call.1} parent=5 // pred_region
        // Predicated region
        $region21: #{tpu_custom_call.1} parent=19 // pred_check
          %p122 = pneg %p66
        $region22: #{tpu_custom_call.1} parent=19 // pred_check_branch
          %124 = sbr.rel (%p122) target = $region24
        $region23: #{tpu_custom_call.1} parent=19 // pred_region
          %s125 = sand.u32 %s56, 1
          %s126 = scalar_lea.sflag [#allocation3], %s125
          %s127 = sand.u32 %s56, 1
          %s128 = smul.addr %s127, 16
          %s129 = scalar_lea.vmem [#allocation2], %s128
          %s131 = ssub.s32 256, 256
          %132 = vsyncadd %s126, %s131
          %s133 = smul.addr %s18, 2
          %s134 = sadd.s32 %s19, %s133
          %s135 = smul.addr %s134, 128
          %s136 = scalar_lea.hbm %s1, %s135
          %s137 = sshll.u32 %s129, 4
          %s138 = int_to_ptr.vmem [resolvable:$true] %s137
          %143 = dma.hbm_to_vmem [thread:$0]  %s136, 256, %s138, %s126, 128, 128, 8
        $region24: #{tpu_custom_call.1} parent=19 // pred_fallthru
          _
      $region20: #{tpu_custom_call.1} parent=5 // pred_fallthru
        _
      %p144 = scmp.le.s32.totalorder 1, %s11
      %p145 = scmp.lt.s32.totalorder %s11, 7
      %p146 = pnand %p144, %p145
      %p147 = pneg %p146
      // Predicated region
      $region25: #{tpu_custom_call.1} parent=5 // pred_check
        _
      $region26: #{tpu_custom_call.1} parent=5 // pred_check_branch
        %149 = sbr.rel (%p146) target = $region28
      $region27: #{tpu_custom_call.1} parent=5 // pred_region
        %s150 = ssub.s32 %s11, 1
        %s151 = sand.u32 %s59, 1
        %s152 = scalar_lea.sflag [#allocation3], %s151
        %s153 = sand.u32 %s59, 1
        %s154 = smul.addr %s153, 16
        %s155 = scalar_lea.vmem [#allocation2], %s154
        // Predicated region
        $region29: #{tpu_custom_call.1} parent=27 // pred_check
          %p156 = pneg %p72
        $region30: #{tpu_custom_call.1} parent=27 // pred_check_branch
          %158 = sbr.rel (%p156) target = $region32
        $region31: #{tpu_custom_call.1} parent=27 // pred_region
          %159 = dma.done %s152, 256
        $region32: #{tpu_custom_call.1} parent=27 // pred_fallthru
          _
        %p160 = pneg %p44
        %p161 = pneg %p41
        %s162 = sand.u32 %s59, 1
        %s163 = scalar_lea.sflag [#allocation3], %s162
        %s164 = sand.u32 %s59, 1
        %s165 = smul.addr %s164, 16
        %s166 = scalar_lea.vmem [#allocation2], %s165
        %p167 = pneg %p72
        %p168 = pneg %p69
        %p169 = pneg %p100
        %p170 = pneg %p97
        %p171 = scmp.lt.s32.totalorder %s20, 5
        %s172 = scalar_select %p171, %s20, 5
        %p173 = scmp.lt.s32.totalorder %s21, 0
        %s174 = scalar_select %p173, %s21, 0
        %s175 = smul.addr %s172, 8
        %s176 = sadd.s32 %s174, %s175
        %s177 = smul.addr %s176, 8
        %s178 = scalar_lea.vmem %s2, %s177
        %p179 = scmp.lt.s32.totalorder %s20, 5
        %s180 = scalar_select %p179, %s20, 5
        %p181 = scmp.lt.s32.totalorder %s21, 0
        %s182 = scalar_select %p181, %s21, 0
        %s183 = smul.addr %s180, 8
        %s184 = sadd.s32 %s182, %s183
        %s185 = smul.addr %s184, 8
        %s186 = scalar_lea.vmem %s2, %s185
        %v187 = vld [vmem:[%s0] sm:$0xff]
        %v188 = vld [vmem:[%s0 + $0x8] sm:$0xff]
        %v189 = vld [vmem:[%s0 + $0x10] sm:$0xff]
        %v190 = vld [vmem:[%s0 + $0x18] sm:$0xff]
        %v191 = vld [vmem:[%s0 + $0x20] sm:$0xff]
        %v192 = vld [vmem:[%s0 + $0x28] sm:$0xff]
        %v193 = vld [vmem:[%s0 + $0x30] sm:$0xff]
        %v194 = vld [vmem:[%s0 + $0x38] sm:$0xff]
        %v195 = vld [vmem:[%s155] sm:$0xff]
        %v196 = vld [vmem:[%s155 + $0x8] sm:$0xff]
        %vm197 = vcmask 130048
        %v199 = vsel %vm197, %v187, 0
        %v202 = vsel %vm197, %v188, 0
        %v205 = vsel %vm197, %v189, 0
        %v208 = vsel %vm197, %v190, 0
        %v211 = vsel %vm197, %v191, 0
        %v214 = vsel %vm197, %v192, 0
        %v217 = vsel %vm197, %v193, 0
        %v220 = vsel %vm197, %v194, 0
        %222 = vmatprep.subr.mxu0 0.0
        %223 = vmatpush1.msra.mxu0 0.0
        %224 = vmatprep.subr.mxu0 0.0
        %225 = vmatpush1.msra.mxu0 0.0
        %226 = vmatprep.subr.mxu0 0.0
        %227 = vmatpush1.msra.mxu0 0.0
        %228 = vmatprep.subr.mxu0 0.0
        %229 = vmatpush1.msra.mxu0 0.0
        %230 = vmatprep.subr.mxu0 0.0
        %231 = vmatpush1.msra.mxu0 0.0
        %232 = vmatprep.subr.mxu0 0.0
        %233 = vmatpush1.msra.mxu0 0.0
        %234 = vmatprep.subr.mxu0 0.0
        %235 = vmatpush1.msra.mxu0 0.0
        %236 = vmatprep.subr.mxu0 0.0
        %237 = vmatpush1.msra.mxu0 0.0
        %238 = vmatprep.subr.mxu0 0.0
        %239 = vmatpush1.msra.mxu0 0.0
        %240 = vmatprep.subr.mxu0 0.0
        %241 = vmatpush1.msra.mxu0 0.0
        %242 = vmatprep.subr.mxu0 0.0
        %243 = vmatpush1.msra.mxu0 0.0
        %244 = vmatprep.subr.mxu0 0.0
        %245 = vmatpush1.msra.mxu0 0.0
        %246 = vmatprep.subr.mxu0 0.0
        %247 = vmatpush1.msra.mxu0 0.0
        %248 = vmatprep.subr.mxu0 0.0
        %249 = vmatpush1.msra.mxu0 0.0
        %250 = vmatprep.subr.mxu0 0.0
        %251 = vmatpush1.msra.mxu0 %v196
        %252 = vmatprep.subr.mxu0 0.0
        %253 = vmatpush1.msra.mxu0 %v195
        %254 = vmatprep.subr.mxu0 0.0
        %255 = vmatpush2.msra.mxu0 0.0
        %256 = vmatprep.subr.mxu0 0.0
        %257 = vmatpush2.msra.mxu0 0.0
        %258 = vmatprep.subr.mxu0 0.0
        %259 = vmatpush2.msra.mxu0 0.0
        %260 = vmatprep.subr.mxu0 0.0
        %261 = vmatpush2.msra.mxu0 0.0
        %262 = vmatprep.subr.mxu0 0.0
        %263 = vmatpush2.msra.mxu0 0.0
        %264 = vmatprep.subr.mxu0 0.0
        %265 = vmatpush2.msra.mxu0 0.0
        %266 = vmatprep.subr.mxu0 0.0
        %267 = vmatpush2.msra.mxu0 0.0
        %268 = vmatprep.subr.mxu0 0.0
        %269 = vmatpush2.msra.mxu0 0.0
        %270 = vmatprep.subr.mxu0 0.0
        %271 = vmatpush2.msra.mxu0 0.0
        %272 = vmatprep.subr.mxu0 0.0
        %273 = vmatpush2.msra.mxu0 0.0
        %274 = vmatprep.subr.mxu0 0.0
        %275 = vmatpush2.msra.mxu0 0.0
        %276 = vmatprep.subr.mxu0 0.0
        %277 = vmatpush2.msra.mxu0 0.0
        %278 = vmatprep.subr.mxu0 0.0
        %279 = vmatpush2.msra.mxu0 0.0
        %280 = vmatprep.subr.mxu0 0.0
        %281 = vmatpush2.msra.mxu0 0.0
        %282 = vmatprep.subr.mxu0 0.0
        %283 = vmatpush2.msra.mxu0 0.0
        %284 = vmatprep.subr.mxu0 0.0
        %285 = vmatpush2.msra.mxu0 0.0
        %286 = vmatprep.mubr.f32.mxu0 0.0
        %287 = vmatmul.mubr.f32.gmra.mxu0 %v199
        %v288 = vpop.f32.mrf.mxu0
        %v289 = vadd.f32 0.0, %v288
        %v290 = vpop.f32.mrf.mxu0
        %291 = vmatprep.mubr.f32.mxu0 0.0
        %292 = vmatmul.mubr.f32.gmra.mxu0 %v202
        %v293 = vpop.f32.mrf.mxu0
        %v294 = vadd.f32 0.0, %v293
        %v295 = vpop.f32.mrf.mxu0
        %296 = vmatprep.mubr.f32.mxu0 0.0
        %297 = vmatmul.mubr.f32.gmra.mxu0 %v205
        %v298 = vpop.f32.mrf.mxu0
        %v299 = vadd.f32 0.0, %v298
        %v300 = vpop.f32.mrf.mxu0
        %301 = vmatprep.mubr.f32.mxu0 0.0
        %302 = vmatmul.mubr.f32.gmra.mxu0 %v208
        %v303 = vpop.f32.mrf.mxu0
        %v304 = vadd.f32 0.0, %v303
        %v305 = vpop.f32.mrf.mxu0
        %306 = vmatprep.mubr.f32.mxu0 0.0
        %307 = vmatmul.mubr.f32.gmra.mxu0 %v211
        %v308 = vpop.f32.mrf.mxu0
        %v309 = vadd.f32 0.0, %v308
        %v310 = vpop.f32.mrf.mxu0
        %311 = vmatprep.mubr.f32.mxu0 0.0
        %312 = vmatmul.mubr.f32.gmra.mxu0 %v214
        %v313 = vpop.f32.mrf.mxu0
        %v314 = vadd.f32 0.0, %v313
        %v315 = vpop.f32.mrf.mxu0
        %316 = vmatprep.mubr.f32.mxu0 0.0
        %317 = vmatmul.mubr.f32.gmra.mxu0 %v217
        %v318 = vpop.f32.mrf.mxu0
        %v319 = vadd.f32 0.0, %v318
        %v320 = vpop.f32.mrf.mxu0
        %321 = vmatprep.mubr.f32.mxu0 0.0
        %322 = vmatmul.mubr.f32.gmra.mxu0 %v220
        %v323 = vpop.f32.mrf.mxu0
        %v324 = vadd.f32 0.0, %v323
        %v325 = vpop.f32.mrf.mxu0
        %326 = vdwg.mxu0
        %v327 = vmax.f32 %v289, 0.0
        %v328 = vmax.f32 %v294, 0.0
        %v329 = vmax.f32 %v299, 0.0
        %v330 = vmax.f32 %v304, 0.0
        %v331 = vmax.f32 %v309, 0.0
        %v332 = vmax.f32 %v314, 0.0
        %v333 = vmax.f32 %v319, 0.0
        %v334 = vmax.f32 %v324, 0.0
        %vm335 = vcmask 261120
        %336 = vst.msk [vmem:[%s186] sm:$0xff] %vm335, %v327
        %337 = vst.msk [vmem:[%s186 + $0x8] sm:$0xff] %vm335, %v328
        %338 = vst.msk [vmem:[%s186 + $0x10] sm:$0xff] %vm335, %v329
        %339 = vst.msk [vmem:[%s186 + $0x18] sm:$0xff] %vm335, %v330
        %340 = vst.msk [vmem:[%s186 + $0x20] sm:$0xff] %vm335, %v331
        %341 = vst.msk [vmem:[%s186 + $0x28] sm:$0xff] %vm335, %v332
        %342 = vst.msk [vmem:[%s186 + $0x30] sm:$0xff] %vm335, %v333
        %343 = vst.msk [vmem:[%s186 + $0x38] sm:$0xff] %vm335, %v334
        %p344 = scmp.lt.s32.totalorder %s20, 5
        %s345 = scalar_select %p344, %s20, 5
        %p346 = scmp.lt.s32.totalorder %s21, 0
        %s347 = scalar_select %p346, %s21, 0
        %s348 = smul.addr %s345, 8
        %s349 = sadd.s32 %s347, %s348
        %s350 = smul.addr %s349, 8
        %s351 = scalar_lea.vmem %s2, %s350
        // Predicated region
        $region33: #{tpu_custom_call.1} parent=27 // pred_check
          %p352 = pneg %p97
        $region34: #{tpu_custom_call.1} parent=27 // pred_check_branch
          %354 = sbr.rel (%p352) target = $region36
        $region35: #{tpu_custom_call.1} parent=27 // pred_region
          _
        $region36: #{tpu_custom_call.1} parent=27 // pred_fallthru
          _
      $region28: #{tpu_custom_call.1} parent=5 // pred_fallthru
        _
      %p355 = scmp.le.s32.totalorder 2, %s11
      // Predicated region
      $region37: #{tpu_custom_call.1} parent=5 // pred_check
        %p356 = pneg %p355
      $region38: #{tpu_custom_call.1} parent=5 // pred_check_branch
        %358 = sbr.rel (%p356) target = $region40
      $region39: #{tpu_custom_call.1} parent=5 // pred_region
        %s359 = ssub.s32 %s11, 2
        // Predicated region
        $region41: #{tpu_custom_call.1} parent=39 // pred_check
          %p360 = pneg %p103
        $region42: #{tpu_custom_call.1} parent=39 // pred_check_branch
          %362 = sbr.rel (%p360) target = $region44
        $region43: #{tpu_custom_call.1} parent=39 // pred_region
          %p363 = scmp.lt.s32.totalorder %s22, 5
          %s364 = scalar_select %p363, %s22, 5
          %p365 = scmp.lt.s32.totalorder %s23, 0
          %s366 = scalar_select %p365, %s23, 0
          %s367 = smul.addr %s364, 8
          %s368 = sadd.s32 %s366, %s367
          %s369 = smul.addr %s368, 8
          %s370 = scalar_lea.vmem %s2, %s369
        $region44: #{tpu_custom_call.1} parent=39 // pred_fallthru
          _
      $region40: #{tpu_custom_call.1} parent=5 // pred_fallthru
        _
    $region6: #{tpu_custom_call.1} parent=1 // loop_footer
      %s15 = sadd.s32 1, %s11
    $region7: #{tpu_custom_call.1} parent=1 // loop_footer_branch
      %10 = sbr.rel target = $region3
    $region8: #{tpu_custom_call.1} parent=1 // loop_exit
      _
    %371 = vsyncpa [#allocation3], 1
    %s372 = scalar_lea.sflag [#allocation3], 1
    %373 = vsyncpa %s372, 1

</llo_original>
